<compile_context>
chip_gen: v7x
topology: tpu7x:2x2x1
jax: 0.10.0
libtpu: 0.0.40
codegen_flags: <defaults>
</compile_context>

<pallas_src>
import functools

import jax
import jax.numpy as jnp
from jax.experimental import pallas as pl
from jax.experimental.pallas import tpu as pltpu

MAT_DIFF_LOSS_SCALE = 0.001
DEFAULT_TILE_N = 4096        # rows of pred per grid step (perf review: >= 4096)
MAX_TILE_N = 8192            # keeps double-buffered pred+target under ~16 MiB
OUT_LANES = 128              # lane-dense partial-sum output row
VMEM_LIMIT_BYTES = 32 * 1024 * 1024


def _round_up(x, m):
    return ((x + m - 1) // m) * m


def _default_num_splits():
    # v7x has 2 TensorCores/chip: shard the point stream across both so the
    # VPU select/reduce chain keeps up with 3.2 TB/s HBM. v5e/v6e are 1-TC:
    # a second "parallel" split is just a serial loop, so skip it there.
    try:
        kind = jax.devices()[0].device_kind.lower()
    except Exception:
        return 1
    return 2 if "v7" in kind else 1


def _get_loss_kernel(pred_ref, target_ref, trans_ref, out_ref, acc_ref, reg_ref,
                     *, n_rows, mat_diff_loss_scale):
    split = pl.program_id(0)
    step = pl.program_id(1)
    steps = pl.num_programs(1)
    last = steps - 1

    # ---- init per-split accumulator; regularizer once at the pipeline head ----
    @pl.when(step == 0)
    def _init():
        acc_ref[...] = jnp.zeros_like(acc_ref)

        @pl.when(split == 0)
        def _reg():
            # Tiny (B, D, D) gram + Frobenius; hides under the first pred DMA.
            trans = trans_ref[...].astype(jnp.float32)
            bsz, dd, _ = trans.shape
            gram = jnp.einsum("bij,bkj->bik", trans, trans,
                              preferred_element_type=jnp.float32)   # T @ T^T
            eye = (jax.lax.broadcasted_iota(jnp.int32, (dd, dd), 0) ==
                   jax.lax.broadcasted_iota(jnp.int32, (dd, dd), 1)
                   ).astype(jnp.float32)
            diff = gram - eye[None, :, :]
            sq = jnp.sum(jnp.sum(diff * diff, axis=2, keepdims=True),
                         axis=1, keepdims=True)                     # (B, 1, 1)
            fro = jnp.sqrt(sq)
            reg_ref[...] = (jnp.sum(fro, axis=0)                    # (1, 1)
                            * jnp.float32(mat_diff_loss_scale / bsz))

    # ---- streaming NLL partial sum over this (tile, C) block ----
    pred = pred_ref[...]                      # native dtype (f32 or bf16)
    target = target_ref[...]                  # (tile, 1) int32
    tn, c = pred.shape
    sub = acc_ref.shape[0]                    # sublane group (8 f32 / 16 bf16)

    col = jax.lax.broadcasted_iota(jnp.int32, (tn, c), 1)
    row = jax.lax.broadcasted_iota(jnp.int32, (tn, 1), 0)
    global_start = (split * steps + step) * tn
    valid = (row + global_start) < n_rows     # masks ragged tail & clamped blocks
    # select, not one-hot multiply: no 0 * (-inf)/NaN hazard, garbage tail -> 0
    mask = (col == target) & valid
    picked = jnp.where(mask, pred, jnp.zeros_like(pred))
    # (tile, C) -> (tile//sub, sub, C): sublane-aligned groups, so the per-step
    # partial reduce is pure vreg adds (VALU); cross-sublane reduce only at end.
    acc_ref[...] += jnp.sum(picked.reshape(tn // sub, sub, c), axis=0,
                            dtype=jnp.float32)

    # ---- finalize this split ----
    @pl.when(step == last)
    def _finalize():
        nll_part = -jnp.sum(acc_ref[...]) * jnp.float32(1.0 / n_rows)

        @pl.when(split == 0)
        def _with_reg():
            total = nll_part + reg_ref[...]                         # (1, 1)
            out_ref[...] = jnp.broadcast_to(total, out_ref.shape
                                            ).astype(out_ref.dtype)

        @pl.when(split != 0)
        def _plain():
            out_ref[...] = jnp.broadcast_to(nll_part, out_ref.shape
                                            ).astype(out_ref.dtype)


def get_loss(pred, target, trans_feat, *,
             mat_diff_loss_scale=MAT_DIFF_LOSS_SCALE,
             tile_n=None, num_splits=None):
    """pred: (N, C) log-probs (f32 or bf16); target: (N,) int; trans_feat: (B, D, D)."""
    n, c = pred.shape
    b, d, _ = trans_feat.shape
    target_2d = target.astype(jnp.int32).reshape(n, 1)

    itemsize = jnp.dtype(pred.dtype).itemsize
    # Sub-32-bit dtypes pack rows along sublanes: round the tile (and size the
    # accumulator's sublane group) to the packing granule.
    granule = {4: 8, 2: 16, 1: 32}.get(itemsize, 8)

    if num_splits is None:
        num_splits = _default_num_splits()
    if tile_n is None:
        tile_n = DEFAULT_TILE_N
    tile_n = min(int(tile_n), MAX_TILE_N)

    per_split = pl.cdiv(n, num_splits)
    tile = max(granule,
               min(_round_up(tile_n, granule), _round_up(per_split, granule)))
    blocks_total = pl.cdiv(n, tile)
    if blocks_total < num_splits:          # tiny inputs: one split is enough
        num_splits = 1
    steps = pl.cdiv(blocks_total, num_splits)

    last_block = blocks_total - 1
    exact = (num_splits * steps == blocks_total)

    def row_block_map(s, i):
        blk = s * steps + i
        if not exact:
            # Redundant tail blocks (blocks_total % num_splits != 0) re-read the
            # last block; the in-kernel global-row mask zeroes their rows.
            blk = jnp.minimum(blk, last_block)
        return (blk, 0)

    kernel = functools.partial(_get_loss_kernel, n_rows=n,
                               mat_diff_loss_scale=mat_diff_loss_scale)

    cost = pl.CostEstimate(
        flops=3 * n * c + 2 * b * d * d * d + 4 * b * d * d,
        transcendentals=b,
        bytes_accessed=(pred.size * itemsize
                        + target_2d.size * 4
                        + trans_feat.size * jnp.dtype(trans_feat.dtype).itemsize
                        + num_splits * 8 * OUT_LANES * 4),
    )

    out = pl.pallas_call(
        kernel,
        out_shape=jax.ShapeDtypeStruct((num_splits * 8, OUT_LANES), jnp.float32),
        grid_spec=pltpu.PrefetchScalarGridSpec(
            num_scalar_prefetch=0,
            grid=(num_splits, steps),
            in_specs=[
                pl.BlockSpec((tile, c), row_block_map),
                pl.BlockSpec((tile, 1), row_block_map),
                pl.BlockSpec((b, d, d), lambda s, i: (0, 0, 0)),   # resident
            ],
            out_specs=pl.BlockSpec((8, OUT_LANES), lambda s, i: (s, 0)),
            scratch_shapes=[pltpu.VMEM((granule, c), jnp.float32),  # NLL partials
                            pltpu.VMEM((1, 1), jnp.float32)],       # reg scalar
        ),
        compiler_params=pltpu.CompilerParams(
            dimension_semantics=("parallel", "arbitrary"),
            vmem_limit_bytes=VMEM_LIMIT_BYTES),
        cost_estimate=cost,
    )(pred, target_2d, trans_feat)

    # out[8*s, 0] = partial mean-NLL of split s (+ scaled regularizer on split 0)
    return jnp.sum(out[0::8, 0])


def _reference(pred, target, trans_feat):
    # Pure-JAX reference for sanity checking.
    nll = -jnp.mean(jnp.take_along_axis(pred.astype(jnp.float32),
                                        target[:, None], axis=1))
    bsz, dim, _ = trans_feat.shape
    tf = trans_feat.astype(jnp.float32)
    gram = jnp.einsum("bij,bkj->bik", tf, tf)
    diff = gram - jnp.eye(dim, dtype=jnp.float32)[None]
    fro = jnp.sqrt(jnp.sum(diff * diff, axis=(1, 2)))
    return nll + jnp.mean(fro) * MAT_DIFF_LOSS_SCALE


if __name__ == "__main__":
    key = jax.random.PRNGKey(0)
    k1, k2, k3 = jax.random.split(key, 3)

    N, C = 16, 8      # points-across-batch, part classes
    B, D = 2, 16      # feature-transform matrices (B, D, D)

    logits = jax.random.normal(k1, (N, C), dtype=jnp.float32)
    pred = jax.nn.log_softmax(logits, axis=-1)             # log-probabilities
    target = jax.random.randint(k2, (N,), 0, C, dtype=jnp.int32)
    trans_feat = jax.random.normal(k3, (B, D, D), dtype=jnp.float32)

    total_loss = jax.block_until_ready(get_loss(pred, target, trans_feat))

    ref = _reference(pred, target, trans_feat)
    assert jnp.allclose(total_loss, ref, rtol=1e-5, atol=1e-5), (total_loss, ref)

    print("KERNEL_OK")
</pallas_src>

<mosaic_0001>
module attributes {stable_mosaic.version = 11 : i64} {
  func.func @_get_loss_kernel(%arg0: i32, %arg1: i32, %arg2: memref<16x8xf32, #tpu.memory_space<vmem>>, %arg3: memref<16x1xi32, #tpu.memory_space<vmem>>, %arg4: memref<2x16x16xf32, #tpu.memory_space<vmem>>, %arg5: memref<8x128xf32, #tpu.memory_space<vmem>>, %arg6: memref<8x8xf32, #tpu.memory_space<vmem>>, %arg7: memref<1x1xf32, #tpu.memory_space<vmem>>) attributes {dimension_semantics = [#tpu.dimension_semantics<parallel>, #tpu.dimension_semantics<arbitrary>], iteration_bounds = array<i64: 1, 1>, scalar_prefetch = 0 : i64, scratch_operands = 2 : i64, tpu.core_type = #tpu.core_type<tc>, window_params = [{transform_indices = @transform_0, window_bounds = array<i64: 16, 8>}, {transform_indices = @transform_1, window_bounds = array<i64: 16, 1>}, {pipeline_mode = #tpu.pipeline_mode<synchronous>, transform_indices = @transform_2, window_bounds = array<i64: 2, 16, 16>}, {transform_indices = @transform_3, window_bounds = array<i64: 8, 128>}]} {
    %c0_i32 = arith.constant 0 : i32
    %0 = arith.cmpi eq, %arg1, %c0_i32 : i32
    %1 = arith.extui %0 : i1 to i32
    %c0_i32_0 = arith.constant 0 : i32
    %2 = arith.cmpi ne, %1, %c0_i32_0 : i32
    scf.if %2 {
      %cst_12 = arith.constant 0.000000e+00 : f32
      %28 = vector.broadcast %cst_12 : f32 to vector<8x8xf32>
      %c0_13 = arith.constant 0 : index
      %c0_14 = arith.constant 0 : index
      %29 = vector.load %arg6[%c0_13, %c0_14] : memref<8x8xf32, #tpu.memory_space<vmem>>, vector<8x8xf32>
      tpu.vector_store %arg6[%c0_13, %c0_14], %28 {strides = array<i32>} : memref<8x8xf32, #tpu.memory_space<vmem>>, vector<8x8xf32>,
      %c0_i32_15 = arith.constant 0 : i32
      %30 = arith.cmpi eq, %arg0, %c0_i32_15 : i32
      %31 = arith.extui %30 : i1 to i32
      %c0_i32_16 = arith.constant 0 : i32
      %32 = arith.cmpi ne, %31, %c0_i32_16 : i32
      scf.if %32 {
        %c0_17 = arith.constant 0 : index
        %c0_18 = arith.constant 0 : index
        %c0_19 = arith.constant 0 : index
        %33 = vector.load %arg4[%c0_17, %c0_18, %c0_19] : memref<2x16x16xf32, #tpu.memory_space<vmem>>, vector<2x16x16xf32>
        "tpu.trace_start"() <{level = 10 : i32, message = "bij,bkj->bik"}> : () -> ()
        %cst_20 = arith.constant dense<0.000000e+00> : vector<2x16x16xf32>
        %34 = tpu.matmul %33, %33, %cst_20 {dimension_numbers = #tpu.dot_dimension_numbers<[2], [2], [1], [1], [0, 0, 0, 1, 1, 1], [0], [0]>} : vector<2x16x16xf32>, vector<2x16x16xf32>, vector<2x16x16xf32> -> vector<2x16x16xf32>
        "tpu.trace_stop"() : () -> ()
        %35 = tpu.iota {dimensions = array<i32: 0>} : vector<16x16xi32>
        %36 = tpu.iota {dimensions = array<i32: 1>} : vector<16x16xi32>
        %37 = arith.cmpi eq, %35, %36 : vector<16x16xi32>
        %38 = arith.extui %37 : vector<16x16xi1> to vector<16x16xi32>
        %39 = arith.sitofp %38 : vector<16x16xi32> to vector<16x16xf32>
        %40 = vector.shape_cast %39 : vector<16x16xf32> to vector<1x16x16xf32>
        %41 = vector.broadcast %40 : vector<1x16x16xf32> to vector<2x16x16xf32>
        %42 = arith.subf %34, %41 : vector<2x16x16xf32>
        %43 = arith.mulf %42, %42 : vector<2x16x16xf32>
        %cst_21 = arith.constant dense<0.000000e+00> : vector<2x16xf32>
        %44 = vector.multi_reduction <add>, %43, %cst_21 [2] : vector<2x16x16xf32> to vector<2x16xf32>
        %45 = vector.shape_cast %44 : vector<2x16xf32> to vector<2x16x1xf32>
        %cst_22 = arith.constant dense<0.000000e+00> : vector<2x1xf32>
        %46 = vector.multi_reduction <add>, %45, %cst_22 [1] : vector<2x16x1xf32> to vector<2x1xf32>
        %47 = vector.shape_cast %46 : vector<2x1xf32> to vector<2x1x1xf32>
        %48 = math.sqrt %47 : vector<2x1x1xf32>
        %cst_23 = arith.constant dense<0.000000e+00> : vector<1x1xf32>
        %49 = vector.multi_reduction <add>, %48, %cst_23 [0] : vector<2x1x1xf32> to vector<1x1xf32>
        %cst_24 = arith.constant 5.000000e-04 : f32
        %50 = vector.broadcast %cst_24 : f32 to vector<1x1xf32>
        %51 = arith.mulf %49, %50 : vector<1x1xf32>
        %c0_25 = arith.constant 0 : index
        %c0_26 = arith.constant 0 : index
        %52 = vector.load %arg7[%c0_25, %c0_26] : memref<1x1xf32, #tpu.memory_space<vmem>>, vector<1x1xf32>
        tpu.vector_store %arg7[%c0_25, %c0_26], %51 {strides = array<i32>} : memref<1x1xf32, #tpu.memory_space<vmem>>, vector<1x1xf32>,
      } else {
      }
    } else {
    }
    %c0 = arith.constant 0 : index
    %c0_1 = arith.constant 0 : index
    %3 = vector.load %arg2[%c0, %c0_1] : memref<16x8xf32, #tpu.memory_space<vmem>>, vector<16x8xf32>
    %c0_2 = arith.constant 0 : index
    %c0_3 = arith.constant 0 : index
    %4 = vector.load %arg3[%c0_2, %c0_3] : memref<16x1xi32, #tpu.memory_space<vmem>>, vector<16x1xi32>
    %5 = tpu.iota {dimensions = array<i32: 1>} : vector<16x8xi32>
    %6 = tpu.iota {dimensions = array<i32: 0>} : vector<16x1xi32>
    %c1_i32 = arith.constant 1 : i32
    %7 = arith.muli %arg0, %c1_i32 : i32
    %8 = arith.addi %7, %arg1 : i32
    %c16_i32 = arith.constant 16 : i32
    %9 = arith.muli %8, %c16_i32 : i32
    %10 = vector.broadcast %9 : i32 to vector<16x1xi32>
    %11 = arith.addi %6, %10 : vector<16x1xi32>
    %c16_i32_4 = arith.constant 16 : i32
    %12 = vector.broadcast %c16_i32_4 : i32 to vector<16x1xi32>
    %13 = arith.cmpi slt, %11, %12 : vector<16x1xi32>
    %14 = vector.broadcast %4 : vector<16x1xi32> to vector<16x8xi32>
    %15 = arith.cmpi eq, %5, %14 : vector<16x8xi32>
    %16 = vector.broadcast %13 : vector<16x1xi1> to vector<16x8xi1>
    %17 = arith.andi %15, %16 : vector<16x8xi1>
    %cst = arith.constant 0.000000e+00 : f32
    %18 = vector.broadcast %cst : f32 to vector<16x8xf32>
    %19 = arith.select %17, %3, %18 : vector<16x8xi1>, vector<16x8xf32>
    %c0_5 = arith.constant 0 : index
    %c0_6 = arith.constant 0 : index
    %20 = vector.load %arg6[%c0_5, %c0_6] : memref<8x8xf32, #tpu.memory_space<vmem>>, vector<8x8xf32>
    %21 = vector.shape_cast %19 : vector<16x8xf32> to vector<2x8x8xf32>
    %cst_7 = arith.constant dense<0.000000e+00> : vector<8x8xf32>
    %22 = vector.multi_reduction <add>, %21, %cst_7 [0] : vector<2x8x8xf32> to vector<8x8xf32>
    %23 = arith.addf %20, %22 : vector<8x8xf32>
    %c0_8 = arith.constant 0 : index
    %c0_9 = arith.constant 0 : index
    %24 = vector.load %arg6[%c0_8, %c0_9] : memref<8x8xf32, #tpu.memory_space<vmem>>, vector<8x8xf32>
    tpu.vector_store %arg6[%c0_8, %c0_9], %23 {strides = array<i32>} : memref<8x8xf32, #tpu.memory_space<vmem>>, vector<8x8xf32>,
    %c0_i32_10 = arith.constant 0 : i32
    %25 = arith.cmpi eq, %arg1, %c0_i32_10 : i32
    %26 = arith.extui %25 : i1 to i32
    %c0_i32_11 = arith.constant 0 : i32
    %27 = arith.cmpi ne, %26, %c0_i32_11 : i32
    scf.if %27 {
      %c0_12 = arith.constant 0 : index
      %c0_13 = arith.constant 0 : index
      %28 = vector.load %arg6[%c0_12, %c0_13] : memref<8x8xf32, #tpu.memory_space<vmem>>, vector<8x8xf32>
      %29 = vector.shape_cast %28 : vector<8x8xf32> to vector<1x8x8xf32>
      %cst_14 = arith.constant dense<0.000000e+00> : vector<1xf32>
      %30 = vector.multi_reduction <add>, %29, %cst_14 [1, 2] : vector<1x8x8xf32> to vector<1xf32>
      %31 = vector.shape_cast %30 : vector<1xf32> to vector<1x1x1xf32>
      %32 = vector.extract %31[0, 0, 0] : f32 from vector<1x1x1xf32>
      %cst_15 = arith.constant 0.000000e+00 : f32
      %33 = arith.subf %cst_15, %32 : f32
      %cst_16 = arith.constant 6.250000e-02 : f32
      %34 = arith.mulf %33, %cst_16 : f32
      %c0_i32_17 = arith.constant 0 : i32
      %35 = arith.cmpi eq, %arg0, %c0_i32_17 : i32
      %36 = arith.extui %35 : i1 to i32
      %c0_i32_18 = arith.constant 0 : i32
      %37 = arith.cmpi ne, %36, %c0_i32_18 : i32
      scf.if %37 {
        %c0_21 = arith.constant 0 : index
        %c0_22 = arith.constant 0 : index
        %41 = vector.load %arg7[%c0_21, %c0_22] : memref<1x1xf32, #tpu.memory_space<vmem>>, vector<1x1xf32>
        %42 = vector.broadcast %34 : f32 to vector<1x1xf32>
        %43 = arith.addf %42, %41 : vector<1x1xf32>
        %44 = vector.shape_cast %43 : vector<1x1xf32> to vector<1x1xf32>
        %45 = vector.broadcast %44 : vector<1x1xf32> to vector<8x128xf32>
        %c0_23 = arith.constant 0 : index
        %c0_24 = arith.constant 0 : index
        %46 = vector.load %arg5[%c0_23, %c0_24] : memref<8x128xf32, #tpu.memory_space<vmem>>, vector<8x128xf32>
        tpu.vector_store %arg5[%c0_23, %c0_24], %45 {strides = array<i32>} : memref<8x128xf32, #tpu.memory_space<vmem>>, vector<8x128xf32>,
      } else {
      }
      %c0_i32_19 = arith.constant 0 : i32
      %38 = arith.cmpi ne, %arg0, %c0_i32_19 : i32
      %39 = arith.extui %38 : i1 to i32
      %c0_i32_20 = arith.constant 0 : i32
      %40 = arith.cmpi ne, %39, %c0_i32_20 : i32
      scf.if %40 {
        %41 = vector.broadcast %34 : f32 to vector<8x128xf32>
        %c0_21 = arith.constant 0 : index
        %c0_22 = arith.constant 0 : index
        %42 = vector.load %arg5[%c0_21, %c0_22] : memref<8x128xf32, #tpu.memory_space<vmem>>, vector<8x128xf32>
        tpu.vector_store %arg5[%c0_21, %c0_22], %41 {strides = array<i32>} : memref<8x128xf32, #tpu.memory_space<vmem>>, vector<8x128xf32>,
      } else {
      }
    } else {
    }
    return
  }
  func.func @transform_0(%arg0: i32, %arg1: i32) -> (i32, i32) {
    %c1_i32 = arith.constant 1 : i32
    %0 = arith.muli %arg0, %c1_i32 : i32
    %1 = arith.addi %0, %arg1 : i32
    %c0_i32 = arith.constant 0 : i32
    %c0_i32_0 = arith.constant 0 : i32
    return %1, %c0_i32 : i32, i32
  }
  func.func @transform_1(%arg0: i32, %arg1: i32) -> (i32, i32) {
    %c1_i32 = arith.constant 1 : i32
    %0 = arith.muli %arg0, %c1_i32 : i32
    %1 = arith.addi %0, %arg1 : i32
    %c0_i32 = arith.constant 0 : i32
    %c0_i32_0 = arith.constant 0 : i32
    return %1, %c0_i32 : i32, i32
  }
  func.func @transform_2(%arg0: i32, %arg1: i32) -> (i32, i32, i32) {
    %c0_i32 = arith.constant 0 : i32
    %c0_i32_0 = arith.constant 0 : i32
    %c0_i32_1 = arith.constant 0 : i32
    %c0_i32_2 = arith.constant 0 : i32
    return %c0_i32, %c0_i32_0, %c0_i32_1 : i32, i32, i32
  }
  func.func @transform_3(%arg0: i32, %arg1: i32) -> (i32, i32) {
    %c0_i32 = arith.constant 0 : i32
    %c0_i32_0 = arith.constant 0 : i32
    return %arg0, %c0_i32 : i32, i32
  }
}

</mosaic_0001>

<llo_original>
// kernel: tpu_custom_call.1
$region0: #{tpu_custom_call.1}
  #allocation0 [shape = 'u32[]', space=smem, size = 0x4, offset = 0x4, fixed_abs, tag = 'smem constant byte address 0x4 - core index']
  #allocation1 [shape = 'u32[144,128]{1,0:T(1,128)}', space=vmem, size = 0x12000, scoped, tag = 'internal scratch']
  #allocation2 [shape = 'f32[8,8]{1,0:T(8,128)}', space=vmem, size = 0x1000, scoped, tag = 'scratch operand']
  #allocation3 [shape = 'f32[1,1]{1,0:T(1,128)}', space=vmem, size = 0x200, scoped, tag = 'scratch operand']
  %s0 = inlined_call_operand.vmem [shape: f32[16,8], index: 0, kind: input, shape index: {}]
  %s1 = inlined_call_operand.vmem [shape: s32[16,1], index: 1, kind: input, shape index: {}]
  %s2 = inlined_call_operand.vmem [shape: f32[2,16,16], index: 2, kind: input, shape index: {}]
  %s3 = inlined_call_operand.hbm [shape: f32[8,128], index: 3, kind: output, shape index: {}]
  %s4 = sld [smem:[#allocation0]]
  $region42: #{tpu_custom_call.1} parent=0
    _
  %s6 = ssub.s32 1, %s4
  %s7 = scalar_select 0, %s6, %s4
  $region1: #{tpu_custom_call.1} parent=0
    #allocation4 [shape = 'u8[4096]{0}', space=vmem, size = 0x1000, scoped, tag = 'output window, operand 0, single buffered']
    #allocation5 [shape = 's32[1]{0}', space=sflag, size = 0x4, scoped, tag = 'scoped memory for tpu_custom_call.1']
    %8 = vsyncpa [#allocation5], 0
    // Predicated region
    $region2: #{tpu_custom_call.1} parent=1 // pred_check
      _
    $region3: #{tpu_custom_call.1} parent=1 // pred_check_branch
      %10 = sbr.rel (0) target = $region5
    $region4: #{tpu_custom_call.1} parent=1 // pred_region
      %s11 = sadd.s32 0, 0
      %s12 = smul.u32 2, %s11
      %p13 = scmp.lt.s32.totalorder %s12, 1
      %s14 = scalar_select %p13, %s12, 1
      %s15 = smul.addr %s14, 8
      %s16 = scalar_lea.vmem %s0, %s15
      %s17 = sadd.s32 0, 0
      %s18 = smul.u32 2, %s17
    $region5: #{tpu_custom_call.1} parent=1 // pred_fallthru
      _
    // Predicated region
    $region6: #{tpu_custom_call.1} parent=1 // pred_check
      _
    $region7: #{tpu_custom_call.1} parent=1 // pred_check_branch
      %20 = sbr.rel (0) target = $region9
    $region8: #{tpu_custom_call.1} parent=1 // pred_region
      %s21 = sadd.s32 0, 0
      %s22 = smul.u32 2, %s21
      %p23 = scmp.lt.s32.totalorder %s22, 1
      %s24 = scalar_select %p23, %s22, 1
      %s25 = smul.addr %s24, 8
      %s26 = scalar_lea.vmem %s1, %s25
      %s27 = sadd.s32 0, 0
      %s28 = smul.u32 2, %s27
    $region9: #{tpu_custom_call.1} parent=1 // pred_fallthru
      _
    // Predicated region
    $region10: #{tpu_custom_call.1} parent=1 // pred_check
      _
    $region11: #{tpu_custom_call.1} parent=1 // pred_check_branch
      %30 = sbr.rel (0) target = $region13
    $region12: #{tpu_custom_call.1} parent=1 // pred_region
      _
    $region13: #{tpu_custom_call.1} parent=1 // pred_fallthru
      _
    %s31 = sadd.s32 0, 0
    %s32 = smul.u32 2, %s31
    %p33 = scmp.lt.s32.totalorder %s32, 1
    %s34 = scalar_select %p33, %s32, 1
    %s35 = smul.addr %s34, 8
    %s36 = scalar_lea.vmem %s0, %s35
    %s37 = sadd.s32 0, 0
    %s38 = smul.u32 2, %s37
    %p39 = scmp.lt.s32.totalorder %s38, 1
    %s40 = scalar_select %p39, %s38, 1
    %s41 = smul.addr %s40, 8
    %s42 = scalar_lea.vmem %s1, %s41
    %s43 = sadd.s32 0, 0
    %s44 = smul.u32 2, %s43
    %p45 = scmp.lt.s32.totalorder %s44, 1
    %s46 = scalar_select %p45, %s44, 1
    %s47 = smul.addr %s46, 8
    %s48 = scalar_lea.vmem %s0, %s47
    %s49 = sadd.s32 0, 0
    %s50 = smul.u32 2, %s49
    %s51 = sadd.s32 0, 0
    %s52 = smul.u32 2, %s51
    %p53 = scmp.lt.s32.totalorder %s52, 1
    %s54 = scalar_select %p53, %s52, 1
    %s55 = smul.addr %s54, 8
    %s56 = scalar_lea.vmem %s1, %s55
    %s57 = sadd.s32 0, 0
    %s58 = smul.u32 2, %s57
    %p59 = scmp.eq.s32.totalorder 0, 0
    // Predicated region
    $region14: #{tpu_custom_call.1} parent=1 // pred_check
      %p60 = pneg %p59
    $region15: #{tpu_custom_call.1} parent=1 // pred_check_branch
      %62 = sbr.rel (%p60) target = $region17
    $region16: #{tpu_custom_call.1} parent=1 // pred_region
      %vm63 = vcmask 64512
      %64 = vst.msk [vmem:[#allocation2] sm:$0xff] %vm63, 0.0
      %p65 = scmp.eq.s32.totalorder 0, 0
      // Predicated region
      $region18: #{tpu_custom_call.1} parent=16 // pred_check
        %p66 = pneg %p65
      $region19: #{tpu_custom_call.1} parent=16 // pred_check_branch
        %68 = sbr.rel (%p66) target = $region21
      $region20: #{tpu_custom_call.1} parent=16 // pred_region
        %v69 = vld [vmem:[%s2] sm:$0xff]
        %v70 = vld [vmem:[%s2 + $0x8] sm:$0xff]
        %v71 = vld [vmem:[%s2 + $0x10] sm:$0xff]
        %v72 = vld [vmem:[%s2 + $0x18] sm:$0xff]
        %vm73 = vcmask 130048
        %v75 = vsel %vm73, %v69, 0
        %v78 = vsel %vm73, %v70, 0
        %80 = vmatprep.subr.mxu0 0.0
        %81 = vmatpush1.xpose.msra.mxu0 %v75
        %82 = vmatprep.subr.mxu0 0.0
        %83 = vmatpush1.xpose.msra.mxu0 %v78
        %84 = vmatprep.subr.mxu0 0.0
        %85 = vmatpush1.xpose.msra.mxu0 0.0
        %86 = vmatprep.subr.mxu0 0.0
        %87 = vmatpush1.xpose.msra.mxu0 0.0
        %88 = vmatprep.subr.mxu0 0.0
        %89 = vmatpush1.xpose.msra.mxu0 0.0
        %90 = vmatprep.subr.mxu0 0.0
        %91 = vmatpush1.xpose.msra.mxu0 0.0
        %92 = vmatprep.subr.mxu0 0.0
        %93 = vmatpush1.xpose.msra.mxu0 0.0
        %94 = vmatprep.subr.mxu0 0.0
        %95 = vmatpush1.xpose.msra.mxu0 0.0
        %96 = vmatprep.subr.mxu0 0.0
        %97 = vmatpush1.xpose.msra.mxu0 0.0
        %98 = vmatprep.subr.mxu0 0.0
        %99 = vmatpush1.xpose.msra.mxu0 0.0
        %100 = vmatprep.subr.mxu0 0.0
        %101 = vmatpush1.xpose.msra.mxu0 0.0
        %102 = vmatprep.subr.mxu0 0.0
        %103 = vmatpush1.xpose.msra.mxu0 0.0
        %104 = vmatprep.subr.mxu0 0.0
        %105 = vmatpush1.xpose.msra.mxu0 0.0
        %106 = vmatprep.subr.mxu0 0.0
        %107 = vmatpush1.xpose.msra.mxu0 0.0
        %108 = vmatprep.subr.mxu0 0.0
        %109 = vmatpush1.xpose.msra.mxu0 0.0
        %110 = vmatprep.subr.mxu0 0.0
        %111 = vmatpush1.xpose.msra.mxu0 0.0
        %112 = vmatprep.subr.mxu0 0.0
        %113 = vmatpush1.xpose.msra.mxu0 0.0
        %114 = vmatprep.subr.mxu0 0.0
        %115 = vmatpush1.xpose.msra.mxu0 0.0
        %116 = vmatprep.subr.mxu0 0.0
        %117 = vmatpush1.xpose.msra.mxu0 0.0
        %118 = vmatprep.subr.mxu0 0.0
        %119 = vmatpush1.xpose.msra.mxu0 0.0
        %120 = vmatprep.subr.mxu0 0.0
        %121 = vmatpush1.xpose.msra.mxu0 0.0
        %122 = vmatprep.subr.mxu0 0.0
        %123 = vmatpush1.xpose.msra.mxu0 0.0
        %124 = vmatprep.subr.mxu0 0.0
        %125 = vmatpush1.xpose.msra.mxu0 0.0
        %126 = vmatprep.subr.mxu0 0.0
        %127 = vmatpush1.xpose.msra.mxu0 0.0
        %128 = vmatprep.subr.mxu0 0.0
        %129 = vmatpush1.xpose.msra.mxu0 0.0
        %130 = vmatprep.subr.mxu0 0.0
        %131 = vmatpush1.xpose.msra.mxu0 0.0
        %132 = vmatprep.subr.mxu0 0.0
        %133 = vmatpush1.xpose.msra.mxu0 0.0
        %134 = vmatprep.subr.mxu0 0.0
        %135 = vmatpush1.xpose.msra.mxu0 0.0
        %136 = vmatprep.subr.mxu0 0.0
        %137 = vmatpush1.xpose.msra.mxu0 0.0
        %138 = vmatprep.subr.mxu0 0.0
        %139 = vmatpush1.xpose.msra.mxu0 0.0
        %140 = vmatprep.subr.mxu0 0.0
        %141 = vmatpush1.xpose.msra.mxu0 0.0
        %142 = vmatprep.subr.mxu0 0.0
        %143 = vmatpush1.xpose.msra.mxu0 0.0
        %144 = vmatprep.mubr.f32.mxu0 0.0
        %145 = vmatmul.mubr.f32.gmra.mrb[0].mxu0 %v75
        %v146 = vpop.f32.mrb[0].mxu0
        %v147 = vadd.f32 0.0, %v146
        %v148 = vpop.f32.mrb[0].mxu0
        %149 = vmatprep.mubr.f32.mxu0 0.0
        %150 = vmatmul.mubr.f32.gmra.mrb[0].mxu0 %v78
        %v151 = vpop.f32.mrb[0].mxu0
        %v152 = vadd.f32 0.0, %v151
        %v153 = vpop.f32.mrb[0].mxu0
        %154 = vdwg.mxu0
        %v156 = vsel %vm73, %v71, 0
        %v159 = vsel %vm73, %v72, 0
        %161 = vmatprep.subr.mxu0 0.0
        %162 = vmatpush1.xpose.msra.mxu0 %v156
        %163 = vmatprep.subr.mxu0 0.0
        %164 = vmatpush1.xpose.msra.mxu0 %v159
        %165 = vmatprep.subr.mxu0 0.0
        %166 = vmatpush1.xpose.msra.mxu0 0.0
        %167 = vmatprep.subr.mxu0 0.0
        %168 = vmatpush1.xpose.msra.mxu0 0.0
        %169 = vmatprep.subr.mxu0 0.0
        %170 = vmatpush1.xpose.msra.mxu0 0.0
        %171 = vmatprep.subr.mxu0 0.0
        %172 = vmatpush1.xpose.msra.mxu0 0.0
        %173 = vmatprep.subr.mxu0 0.0
        %174 = vmatpush1.xpose.msra.mxu0 0.0
        %175 = vmatprep.subr.mxu0 0.0
        %176 = vmatpush1.xpose.msra.mxu0 0.0
        %177 = vmatprep.subr.mxu0 0.0
        %178 = vmatpush1.xpose.msra.mxu0 0.0
        %179 = vmatprep.subr.mxu0 0.0
        %180 = vmatpush1.xpose.msra.mxu0 0.0
        %181 = vmatprep.subr.mxu0 0.0
        %182 = vmatpush1.xpose.msra.mxu0 0.0
        %183 = vmatprep.subr.mxu0 0.0
        %184 = vmatpush1.xpose.msra.mxu0 0.0
        %185 = vmatprep.subr.mxu0 0.0
        %186 = vmatpush1.xpose.msra.mxu0 0.0
        %187 = vmatprep.subr.mxu0 0.0
        %188 = vmatpush1.xpose.msra.mxu0 0.0
        %189 = vmatprep.subr.mxu0 0.0
        %190 = vmatpush1.xpose.msra.mxu0 0.0
        %191 = vmatprep.subr.mxu0 0.0
        %192 = vmatpush1.xpose.msra.mxu0 0.0
        %193 = vmatprep.subr.mxu0 0.0
        %194 = vmatpush1.xpose.msra.mxu0 0.0
        %195 = vmatprep.subr.mxu0 0.0
        %196 = vmatpush1.xpose.msra.mxu0 0.0
        %197 = vmatprep.subr.mxu0 0.0
        %198 = vmatpush1.xpose.msra.mxu0 0.0
        %199 = vmatprep.subr.mxu0 0.0
        %200 = vmatpush1.xpose.msra.mxu0 0.0
        %201 = vmatprep.subr.mxu0 0.0
        %202 = vmatpush1.xpose.msra.mxu0 0.0
        %203 = vmatprep.subr.mxu0 0.0
        %204 = vmatpush1.xpose.msra.mxu0 0.0
        %205 = vmatprep.subr.mxu0 0.0
        %206 = vmatpush1.xpose.msra.mxu0 0.0
        %207 = vmatprep.subr.mxu0 0.0
        %208 = vmatpush1.xpose.msra.mxu0 0.0
        %209 = vmatprep.subr.mxu0 0.0
        %210 = vmatpush1.xpose.msra.mxu0 0.0
        %211 = vmatprep.subr.mxu0 0.0
        %212 = vmatpush1.xpose.msra.mxu0 0.0
        %213 = vmatprep.subr.mxu0 0.0
        %214 = vmatpush1.xpose.msra.mxu0 0.0
        %215 = vmatprep.subr.mxu0 0.0
        %216 = vmatpush1.xpose.msra.mxu0 0.0
        %217 = vmatprep.subr.mxu0 0.0
        %218 = vmatpush1.xpose.msra.mxu0 0.0
        %219 = vmatprep.subr.mxu0 0.0
        %220 = vmatpush1.xpose.msra.mxu0 0.0
        %221 = vmatprep.subr.mxu0 0.0
        %222 = vmatpush1.xpose.msra.mxu0 0.0
        %223 = vmatprep.subr.mxu0 0.0
        %224 = vmatpush1.xpose.msra.mxu0 0.0
        %225 = vmatprep.mubr.f32.mxu0 0.0
        %226 = vmatmul.mubr.f32.gmra.mrb[0].mxu0 %v156
        %v227 = vpop.f32.mrb[0].mxu0
        %v228 = vadd.f32 0.0, %v227
        %v229 = vpop.f32.mrb[0].mxu0
        %230 = vmatprep.mubr.f32.mxu0 0.0
        %231 = vmatmul.mubr.f32.gmra.mrb[0].mxu0 %v159
        %v232 = vpop.f32.mrb[0].mxu0
        %v233 = vadd.f32 0.0, %v232
        %v234 = vpop.f32.mrb[0].mxu0
        %235 = vdwg.mxu0
        %v236 = vlaneseq
        %v237 = vshrl.u32 %v236, 7
        %v238 = vadd.s32 %v237, 8
        %v239 = vlaneseq
        %v240 = vand.u32 %v239, 127
        %vm241 = vcmp.eq.s32.totalorder %v237, %v240
        %vm242 = vcmp.eq.s32.totalorder %v238, %v240
        %v243 = vsel %vm241, 1, 0
        %v244 = vsel %vm242, 1, 0
        %v245 = vcvt.s32.f32 %v243
        %v246 = vcvt.s32.f32 %v244
        %v247 = vsub.f32 %v147, %v245
        %v248 = vsub.f32 %v152, %v246
        %v249 = vsub.f32 %v228, %v245
        %v250 = vsub.f32 %v233, %v246
        %v251 = vmul.f32 %v247, %v247
        %v252 = vmul.f32 %v248, %v248
        %v253 = vmul.f32 %v249, %v249
        %v254 = vmul.f32 %v250, %v250
        %v255 = vsel %vm73, %v251, 0.0
        %256 = vadd.xlane.f32.xlu0 %v255
        %v257 = vpop.xlane.xlu0 %256
        %v258 = vsel %vm73, %v252, 0.0
        %259 = vadd.xlane.f32.xlu0 %v258
        %v260 = vpop.xlane.xlu0 %259
        %v261 = vsel %vm73, %v253, 0.0
        %262 = vadd.xlane.f32.xlu0 %v261
        %v263 = vpop.xlane.xlu0 %262
        %v264 = vsel %vm73, %v254, 0.0
        %265 = vadd.xlane.f32.xlu0 %v264
        %v266 = vpop.xlane.xlu0 %265
        %v267 = vadd.f32 %v257, %v260
        %v268 = vrot.slane %v267, 4
        %v269 = vadd.f32 %v267, %v268
        %v270 = vrot.slane %v269, 2
        %v271 = vadd.f32 %v269, %v270
        %v272 = vrot.slane %v271, 1
        %v273 = vadd.f32 %v271, %v272
        %v274 = vadd.f32 %v263, %v266
        %v275 = vrot.slane %v274, 4
        %v276 = vadd.f32 %v274, %v275
        %v277 = vrot.slane %v276, 2
        %v278 = vadd.f32 %v276, %v277
        %v279 = vrot.slane %v278, 1
        %v280 = vadd.f32 %v278, %v279
        %v281 = vrsqrt.pop %v273
        %v282 = vmul.f32 %v273, %v281
        %vm283 = vcmp.eq.f32.partialorder %v273, inf
        %v284 = vsel %vm283, %v273, %v282
        %vm285 = vcmp.eq.f32.partialorder %v273, 0.0
        %v286 = vand.u32 %v273, 2147483648
        %v287 = vsel %vm285, %v286, %v284
        %v288 = vrsqrt.pop %v280
        %v289 = vmul.f32 %v280, %v288
        %vm290 = vcmp.eq.f32.partialorder %v280, inf
        %v291 = vsel %vm290, %v280, %v289
        %vm292 = vcmp.eq.f32.partialorder %v280, 0.0
        %v293 = vand.u32 %v280, 2147483648
        %v294 = vsel %vm292, %v293, %v291
        %v295 = vadd.f32 %v287, %v294
        %v296 = vmul.f32 %v295, 0.0005
        %vm297 = vcmask 0
        %298 = vst.msk [vmem:[#allocation3] sm:$0x1] %vm297, %v296
      $region21: #{tpu_custom_call.1} parent=16 // pred_fallthru
        _
    $region17: #{tpu_custom_call.1} parent=1 // pred_fallthru
      _
    %v299 = vld [vmem:[%s48] sm:$0xff]
    %v300 = vld [vmem:[%s48 + $0x8] sm:$0xff]
    %v301 = vld [vmem:[%s56] sm:$0xff]
    %v302 = vld [vmem:[%s56 + $0x8] sm:$0xff]
    %v303 = vlaneseq
    %v304 = vand.u32 %v303, 127
    %v305 = vlaneseq
    %v306 = vshrl.u32 %v305, 7
    %v307 = vadd.s32 %v306, 8
    %s308 = sadd.s32 0, 0
    %s309 = smul.u32 %s308, 16
    %v310 = vstv %s309
    %v311 = vadd.s32 %v306, %v310
    %v312 = vadd.s32 %v307, %v310
    %vm313 = vcmp.lt.s32.totalorder %v311, 16
    %vm314 = vcmp.lt.s32.totalorder %v312, 16
    %315 = vset.pattern.permute.xlu0 0
    %316 = vperm.xlu0 %315, %v301
    %v317 = vpop.permute.xlu0 %316
    %318 = vset.pattern.permute.xlu0 0
    %319 = vperm.xlu0 %318, %v302
    %v320 = vpop.permute.xlu0 %319
    %vm321 = vcmp.eq.s32.totalorder %v304, %v317
    %vm322 = vcmp.eq.s32.totalorder %v304, %v320
    %v323 = vsel %vm313, 1, 0
    %v324 = vsel %vm314, 1, 0
    %vm325 = vcmp.eq.s32.totalorder %v323, 1
    %vm326 = vcmp.eq.s32.totalorder %v324, 1
    %vm327 = vmand %vm321, %vm325
    %vm328 = vmand %vm322, %vm326
    %v329 = vsel %vm327, %v299, 0.0
    %v330 = vsel %vm328, %v300, 0.0
    %v331 = vld [vmem:[#allocation2] sm:$0xff]
    %vm332 = vcmask 64512
    %v333 = vsel %vm332, %v329, 0.0
    %v334 = vsel %vm332, %v330, 0.0
    %v335 = vadd.f32 %v333, %v334
    %v336 = vadd.f32 %v331, %v335
    %337 = vst.msk [vmem:[#allocation2] sm:$0xff] %vm332, %v336
    // Predicated region
    $region22: #{tpu_custom_call.1} parent=1 // pred_check
      %p338 = pneg %p59
    $region23: #{tpu_custom_call.1} parent=1 // pred_check_branch
      %340 = sbr.rel (%p338) target = $region25
    $region24: #{tpu_custom_call.1} parent=1 // pred_region
      %v341 = vld [vmem:[#allocation2] sm:$0xff]
      %v342 = vsel %vm332, %v341, 0.0
      %343 = vadd.xlane.f32.xlu0 %v342
      %v344 = vpop.xlane.xlu0 %343
      %v345 = vrot.slane %v344, 4
      %v346 = vadd.f32 %v344, %v345
      %v347 = vrot.slane %v346, 2
      %v348 = vadd.f32 %v346, %v347
      %v349 = vrot.slane %v348, 1
      %v350 = vadd.f32 %v348, %v349
      %s351 = vtos %v350
      %s352 = ssub.f32 0.0, %s351
      %s353 = smul.f32 %s352, 0.0625
      %p354 = scmp.eq.s32.totalorder 0, 0
      // Predicated region
      $region26: #{tpu_custom_call.1} parent=24 // pred_check
        %p355 = pneg %p354
      $region27: #{tpu_custom_call.1} parent=24 // pred_check_branch
        %357 = sbr.rel (%p355) target = $region29
      $region28: #{tpu_custom_call.1} parent=24 // pred_region
        %v358 = vld [vmem:[#allocation3] sm:$0x1]
        %v359 = vstv %s353
        %v360 = vadd.f32 %v359, %v358
        %v362 = vlaneseq
        %v363 = vshrl.u32 %v362, 7
        %v364 = vsub.s32 0, %v363
        %v365 = vrot.slane %v360, %v364
        %366 = vset.pattern.permute.xlu0 0
        %367 = vperm.xlu0 %366, %v365
        %v368 = vpop.permute.xlu0 %367
        %370 = vst [vmem:[#allocation4] sm:$0xff] %v368
      $region29: #{tpu_custom_call.1} parent=24 // pred_fallthru
        _
      %p371 = scmp.ne.s32.totalorder 0, 0
      // Predicated region
      $region30: #{tpu_custom_call.1} parent=24 // pred_check
        %p372 = pneg %p371
      $region31: #{tpu_custom_call.1} parent=24 // pred_check_branch
        %374 = sbr.rel (%p372) target = $region33
      $region32: #{tpu_custom_call.1} parent=24 // pred_region
        %v375 = vstv %s353
        %376 = vst [vmem:[#allocation4] sm:$0xff] %v375
      $region33: #{tpu_custom_call.1} parent=24 // pred_fallthru
        _
    $region25: #{tpu_custom_call.1} parent=1 // pred_fallthru
      _
    // Predicated region
    $region34: #{tpu_custom_call.1} parent=1 // pred_check
      _
    $region35: #{tpu_custom_call.1} parent=1 // pred_check_branch
      %378 = sbr.rel (0) target = $region37
    $region36: #{tpu_custom_call.1} parent=1 // pred_region
      %s380 = ssub.s32 128, 128
      %381 = vsyncadd [#allocation5], %s380
      %s383 = sshll.u32 [#allocation4], 4
      %s384 = int_to_ptr.vmem [resolvable:$true] %s383
      %386 = dma.vmem_to_hbm [thread:$0]  %s384, 128, %s3, [#allocation5]
    $region37: #{tpu_custom_call.1} parent=1 // pred_fallthru
      _
    // Predicated region
    $region38: #{tpu_custom_call.1} parent=1 // pred_check
      _
    $region39: #{tpu_custom_call.1} parent=1 // pred_check_branch
      %388 = sbr.rel (0) target = $region41
    $region40: #{tpu_custom_call.1} parent=1 // pred_region
      %389 = dma.done [#allocation5], 128
    $region41: #{tpu_custom_call.1} parent=1 // pred_fallthru
      _
    %390 = vsyncpa [#allocation5], 1

</llo_original>
